<compile_context>
chip_gen: v7x
topology: tpu7x:2x2x1
jax: 0.10.0
libtpu: 0.0.40
codegen_flags: <defaults>
</compile_context>

<pallas_src>
import functools
import math

import jax
import jax.numpy as jnp
from jax import lax
from jax.experimental import pallas as pl
from jax.experimental.pallas import tpu as pltpu


def _pick_time_chunk(T, target=16):
    """Largest time chunk <= target dividing T (amortizes ~0.35us/grid-step)."""
    for tc in range(min(T, target), 0, -1):
        if T % tc == 0:
            return tc
    return T


def _pick_row_tile(N, target=512):
    """Row (M) tile for the hoisted input-gate matmul.

    Decoupled from the recurrence time chunk (no serial dependency): use big
    tiles for MXU fill and fewer grid steps. Prefer multiples of 256
    (v6e/v7x MXU), then 128 (v5e), then 8 (sublane); must divide N, else N."""
    if N <= target:
        return N
    for align in (256, 128, 8):
        start = target - (target % align)
        for r in range(start, align - 1, -align):
            if N % r == 0:
                return r
    return N


def _vmem_limit(entries, headroom=4 << 20):
    """Footprint-based VMEM limit (v7x only has 64 MiB physical VMEM)."""
    total = headroom
    for shape, dtype, bufs in entries:
        total += bufs * math.prod(shape) * jnp.dtype(dtype).itemsize
    return int(min(max(total, 16 << 20), 64 << 20))


# ----------------------------------------------------------------------------
# Kernel 1: hoisted, gate-fused input matmul
#   gi = x @ W_ih(I,3H) + (b_ih + [b_hr, b_hz, 0])        -> bf16 (N, 3H)
# grid = (row-chunks,)  -- fully parallel, big lane-dense tiles.
# ----------------------------------------------------------------------------
def _igates_kernel(x_ref, w_ref, b_ref, o_ref):
    # x: (rows, I) bf16   w: (I, 3H) bf16   b: (1, 3H) f32   o: (rows, 3H) bf16
    y = jnp.dot(x_ref[...], w_ref[...], preferred_element_type=jnp.float32)
    o_ref[...] = (y + b_ref[...]).astype(o_ref.dtype)


def igates_forward(x_flat, w_ih, b_fold, *, row_tile):
    """x_flat: (N, I) bf16; w_ih: (I, 3H) bf16; b_fold: (1, 3H) f32."""
    N, I = x_flat.shape
    H3 = w_ih.shape[-1]
    limit = _vmem_limit([
        ((row_tile, I), jnp.bfloat16, 2),     # double-buffered x tiles
        ((I, H3), jnp.bfloat16, 2),           # fused W_ih
        ((1, H3), jnp.float32, 2),            # fused bias
        ((row_tile, H3), jnp.bfloat16, 2),    # output tiles
    ])
    return pl.pallas_call(
        _igates_kernel,
        out_shape=jax.ShapeDtypeStruct((N, H3), jnp.bfloat16),
        grid=(N // row_tile,),
        in_specs=[
            pl.BlockSpec((row_tile, I), lambda c: (c, 0)),
            pl.BlockSpec((I, H3), lambda c: (0, 0)),
            pl.BlockSpec((1, H3), lambda c: (0, 0)),
        ],
        out_specs=pl.BlockSpec((row_tile, H3), lambda c: (c, 0)),
        compiler_params=pltpu.CompilerParams(
            dimension_semantics=("parallel",),
            vmem_limit_bytes=limit),
    )(x_flat, w_ih, b_fold)


# ----------------------------------------------------------------------------
# Kernel 2: GRU recurrence over a chunked time grid, hidden state in VMEM.
# PyTorch gate order (r, z, n), b_hr/b_hz pre-folded into gi:
#   r  = sigmoid(gi_r + h W_hr)
#   z  = sigmoid(gi_z + h W_hz)
#   n  = tanh   (gi_n + r * (h W_hn + b_hn))
#   h' = (1 - z) * n + z * h
# One fused (B, H) @ (H, 3H) matmul per step; gates sliced from the result.
# ----------------------------------------------------------------------------
def _gru_kernel(gi_ref, whh_ref, bhn_ref, out_ref, hT_ref, h_scratch, *, tc):
    c = pl.program_id(0)

    @pl.when(c == 0)
    def _init():
        # nn.GRU default: zero initial hidden state.
        h_scratch[...] = jnp.zeros_like(h_scratch)

    B, H = h_scratch.shape
    w = whh_ref[...]                                   # (H, 3H) bf16, loop-invariant
    b_n = jnp.broadcast_to(bhn_ref[...], (B, H))       # broadcast hoisted out of loop

    def step(tt, h):
        gi = gi_ref[tt].astype(jnp.float32)            # (B, 3H): pre-acts in f32
        gh = jnp.dot(h.astype(jnp.bfloat16), w,
                     preferred_element_type=jnp.float32)   # single fused MXU push
        r = jax.nn.sigmoid(gi[:, 0:H] + gh[:, 0:H])
        z = jax.nn.sigmoid(gi[:, H:2 * H] + gh[:, H:2 * H])
        n = jnp.tanh(gi[:, 2 * H:] + r * (gh[:, 2 * H:] + b_n))
        h = (1.0 - z) * n + z * h
        out_ref[tt] = h.astype(out_ref.dtype)          # leading-dim store (aligned)
        return h

    # fori_loop keeps gi loads inside the serial body (bounded live ranges).
    h = lax.fori_loop(0, tc, step, h_scratch[...], unroll=True)
    h_scratch[...] = h

    @pl.when(c == pl.num_programs(0) - 1)              # write final hidden only once
    def _final():
        hT_ref[...] = h.astype(hT_ref.dtype)


def gru_forward(gi, w_hh, b_hn, *, tc, out_dtype):
    """gi: (T, B, 3H) bf16; w_hh: (H, 3H) bf16; b_hn: (1, H) f32."""
    T, B, H3 = gi.shape
    H = H3 // 3
    limit = _vmem_limit([
        ((tc, B, H3), gi.dtype, 2),       # gi chunks (double-buffered)
        ((H, H3), jnp.bfloat16, 2),       # fused W_hh
        ((1, H), jnp.float32, 2),         # b_hn
        ((tc, B, H), out_dtype, 2),       # output chunks
        ((B, H), jnp.float32, 2),         # final-hidden output
        ((B, H), jnp.float32, 1),         # h scratch
    ])
    out, h_T = pl.pallas_call(
        functools.partial(_gru_kernel, tc=tc),
        out_shape=(
            jax.ShapeDtypeStruct((T, B, H), out_dtype),
            jax.ShapeDtypeStruct((B, H), jnp.float32),
        ),
        grid=(T // tc,),
        in_specs=[
            pl.BlockSpec((tc, B, H3), lambda c: (c, 0, 0)),
            pl.BlockSpec((H, H3), lambda c: (0, 0)),
            pl.BlockSpec((1, H), lambda c: (0, 0)),
        ],
        out_specs=[
            pl.BlockSpec((tc, B, H), lambda c: (c, 0, 0)),
            pl.BlockSpec((B, H), lambda c: (0, 0)),
        ],
        scratch_shapes=[pltpu.VMEM((B, H), jnp.float32)],
        compiler_params=pltpu.CompilerParams(
            # Time axis carries the hidden state -> must stay sequential.
            dimension_semantics=("arbitrary",),
            vmem_limit_bytes=limit),
    )(gi, w_hh, b_hn)
    return out, h_T


# ----------------------------------------------------------------------------
# Encoder module mirroring the PyTorch API
# ----------------------------------------------------------------------------
class PallasSeq2SeqEncoder:
    def __init__(self, vocab_size, embed_size, num_hiddens, num_layers,
                 dropout=0.0, *, key):
        self.V, self.E, self.H, self.L = vocab_size, embed_size, num_hiddens, num_layers
        del dropout  # inference: inter-layer dropout is identity (dropout=0)
        H = num_hiddens
        s = 1.0 / float(math.sqrt(float(num_hiddens)))
        keys = jax.random.split(key, 1 + 4 * num_layers)
        # bf16 parameter storage: matches MXU operand dtype, halves DMA traffic.
        # (Deviates from f32 PyTorch params only to bf16 tolerance -- inference.)
        self.embedding = jax.random.normal(
            keys[0], (vocab_size, embed_size), jnp.float32).astype(jnp.bfloat16)
        self.layers = []
        for l in range(num_layers):
            in_dim = embed_size if l == 0 else num_hiddens
            k = keys[1 + 4 * l: 1 + 4 * (l + 1)]
            # Gate-fused layouts: columns [r | z | n], each of width H.
            w_ih = jax.random.uniform(k[0], (in_dim, 3 * H), jnp.float32, -s, s)
            w_hh = jax.random.uniform(k[1], (H, 3 * H), jnp.float32, -s, s)
            b_ih = jax.random.uniform(k[2], (1, 3 * H), jnp.float32, -s, s)
            b_hh = jax.random.uniform(k[3], (1, 3 * H), jnp.float32, -s, s)
            # Fold b_hr / b_hz into the precomputed input gates; b_hn stays in
            # the recurrence (it is scaled by the reset gate).
            b_fold = b_ih.at[:, :2 * H].add(b_hh[:, :2 * H])
            self.layers.append(dict(
                w_ih=w_ih.astype(jnp.bfloat16),     # (I, 3H) bf16
                w_hh=w_hh.astype(jnp.bfloat16),     # (H, 3H) bf16
                b_fold=b_fold,                      # (1, 3H) f32
                b_hn=b_hh[:, 2 * H:],               # (1, H) f32
            ))

    def forward(self, X, *args):
        # X: (B, T) int32 token ids (embedded batch-first, then time-major).
        B, T = X.shape
        N = T * B
        tc = _pick_time_chunk(T)
        row_tile = _pick_row_tile(N)
        tok = jnp.transpose(X).reshape(N)                  # time-major row order
        x = jnp.take(self.embedding, tok, axis=0)          # (N, E) bf16 -- JAX glue
        finals = []
        out = None
        for li, layer in enumerate(self.layers):
            last = li == self.L - 1
            gi = igates_forward(x, layer["w_ih"], layer["b_fold"],
                                row_tile=row_tile)          # (N, 3H) bf16
            gi = gi.reshape(T, B, 3 * self.H)               # free row-major reshape
            out, h_T = gru_forward(
                gi, layer["w_hh"], layer["b_hn"], tc=tc,
                out_dtype=jnp.float32 if last else jnp.bfloat16)
            finals.append(h_T)
            if not last:
                x = out.reshape(N, self.H)                  # bf16 hand-off
        output = out                                        # (T, B, H) f32
        state = jnp.stack(finals, axis=0)                   # (num_layers, B, H) f32
        return output, state


# ----------------------------------------------------------------------------
# Pure-JAX reference (same bf16-stored parameters, f32 math) for validation.
# ----------------------------------------------------------------------------
def _reference_forward(enc, X):
    B, T = X.shape
    H = enc.H
    x = jnp.transpose(jnp.take(enc.embedding, X, axis=0),
                      (1, 0, 2)).astype(jnp.float32)        # (T, B, E)
    finals = []
    for layer in enc.layers:
        w_ih = layer["w_ih"].astype(jnp.float32)
        w_hh = layer["w_hh"].astype(jnp.float32)
        b_fold, b_hn = layer["b_fold"], layer["b_hn"]

        def step(h, x_t, w_ih=w_ih, w_hh=w_hh, b_fold=b_fold, b_hn=b_hn):
            gi = x_t @ w_ih + b_fold
            gh = h @ w_hh
            r = jax.nn.sigmoid(gi[:, :H] + gh[:, :H])
            z = jax.nn.sigmoid(gi[:, H:2 * H] + gh[:, H:2 * H])
            n = jnp.tanh(gi[:, 2 * H:] + r * (gh[:, 2 * H:] + b_hn))
            h = (1.0 - z) * n + z * h
            return h, h

        h_T, x = jax.lax.scan(step, jnp.zeros((B, H), jnp.float32), x)
        finals.append(h_T)
    return x, jnp.stack(finals, axis=0)


if __name__ == "__main__":
    B, T = 2, 8
    vocab_size, embed_size, num_hiddens, num_layers = 32, 16, 32, 2

    key = jax.random.PRNGKey(0)
    k_param, k_tok = jax.random.split(key, 2)

    enc = PallasSeq2SeqEncoder(vocab_size, embed_size, num_hiddens, num_layers,
                               key=k_param)

    X = jax.random.randint(k_tok, (B, T), 0, vocab_size, dtype=jnp.int32)
    output, state = enc.forward(X)
    jax.block_until_ready((output, state))

    assert output.shape == (T, B, num_hiddens)
    assert state.shape == (num_layers, B, num_hiddens)
    assert output.dtype == jnp.float32 and state.dtype == jnp.float32
    assert bool(jnp.all(jnp.isfinite(output)))
    assert bool(jnp.all(jnp.isfinite(state)))

    ref_out, ref_state = _reference_forward(enc, X)
    assert bool(jnp.allclose(output, ref_out, atol=3e-2, rtol=3e-2))
    assert bool(jnp.allclose(state, ref_state, atol=3e-2, rtol=3e-2))
    print("KERNEL_OK")
</pallas_src>

<mosaic_0001>
module attributes {stable_mosaic.version = 11 : i64} {
  func.func @_igates_kernel(%arg0: i32, %arg1: memref<16x16xbf16, #tpu.memory_space<vmem>>, %arg2: memref<16x96xbf16, #tpu.memory_space<vmem>>, %arg3: memref<1x96xf32, #tpu.memory_space<vmem>>, %arg4: memref<16x96xbf16, #tpu.memory_space<vmem>>) attributes {dimension_semantics = [#tpu.dimension_semantics<parallel>], iteration_bounds = array<i64: 1>, scalar_prefetch = 0 : i64, scratch_operands = 0 : i64, tpu.core_type = #tpu.core_type<tc>, window_params = [{transform_indices = @transform_0, window_bounds = array<i64: 16, 16>}, {pipeline_mode = #tpu.pipeline_mode<synchronous>, transform_indices = @transform_1, window_bounds = array<i64: 16, 96>}, {pipeline_mode = #tpu.pipeline_mode<synchronous>, transform_indices = @transform_2, window_bounds = array<i64: 1, 96>}, {transform_indices = @transform_3, window_bounds = array<i64: 16, 96>}]} {
    %c0 = arith.constant 0 : index
    %c0_0 = arith.constant 0 : index
    %0 = vector.load %arg1[%c0, %c0_0] : memref<16x16xbf16, #tpu.memory_space<vmem>>, vector<16x16xbf16>
    %c0_1 = arith.constant 0 : index
    %c0_2 = arith.constant 0 : index
    %1 = vector.load %arg2[%c0_1, %c0_2] : memref<16x96xbf16, #tpu.memory_space<vmem>>, vector<16x96xbf16>
    %cst = arith.constant dense<0.000000e+00> : vector<16x96xf32>
    %2 = tpu.matmul %0, %1, %cst {dimension_numbers = #tpu.dot_dimension_numbers<[1], [0], [0], [1], [0, 0, 1, 1], [], []>} : vector<16x16xbf16>, vector<16x96xbf16>, vector<16x96xf32> -> vector<16x96xf32>
    %c0_3 = arith.constant 0 : index
    %c0_4 = arith.constant 0 : index
    %3 = vector.load %arg3[%c0_3, %c0_4] : memref<1x96xf32, #tpu.memory_space<vmem>>, vector<1x96xf32>
    %4 = vector.broadcast %3 : vector<1x96xf32> to vector<16x96xf32>
    %5 = arith.addf %2, %4 : vector<16x96xf32>
    %6 = arith.truncf %5 : vector<16x96xf32> to vector<16x96xbf16>
    %c0_5 = arith.constant 0 : index
    %c0_6 = arith.constant 0 : index
    %7 = vector.load %arg4[%c0_5, %c0_6] : memref<16x96xbf16, #tpu.memory_space<vmem>>, vector<16x96xbf16>
    tpu.vector_store %arg4[%c0_5, %c0_6], %6 {strides = array<i32>} : memref<16x96xbf16, #tpu.memory_space<vmem>>, vector<16x96xbf16>,
    return
  }
  func.func @transform_0(%arg0: i32) -> (i32, i32) {
    %c0_i32 = arith.constant 0 : i32
    %c0_i32_0 = arith.constant 0 : i32
    return %arg0, %c0_i32 : i32, i32
  }
  func.func @transform_1(%arg0: i32) -> (i32, i32) {
    %c0_i32 = arith.constant 0 : i32
    %c0_i32_0 = arith.constant 0 : i32
    %c0_i32_1 = arith.constant 0 : i32
    return %c0_i32, %c0_i32_0 : i32, i32
  }
  func.func @transform_2(%arg0: i32) -> (i32, i32) {
    %c0_i32 = arith.constant 0 : i32
    %c0_i32_0 = arith.constant 0 : i32
    %c0_i32_1 = arith.constant 0 : i32
    return %c0_i32, %c0_i32_0 : i32, i32
  }
  func.func @transform_3(%arg0: i32) -> (i32, i32) {
    %c0_i32 = arith.constant 0 : i32
    %c0_i32_0 = arith.constant 0 : i32
    return %arg0, %c0_i32 : i32, i32
  }
}

</mosaic_0001>

<llo_original>
// kernel: tpu_custom_call.1
$region0: #{tpu_custom_call.1}
  #allocation0 [shape = 'u32[]', space=smem, size = 0x4, offset = 0x4, fixed_abs, tag = 'smem constant byte address 0x4 - core index']
  #allocation1 [shape = 'u32[144,128]{1,0:T(1,128)}', space=vmem, size = 0x12000, scoped, tag = 'internal scratch']
  %s0 = inlined_call_operand.hbm [shape: bf16[16,16], index: 0, kind: input, shape index: {}]
  %s1 = inlined_call_operand.hbm [shape: bf16[16,96], index: 1, kind: input, shape index: {}]
  %s2 = inlined_call_operand.vmem [shape: f32[1,96], index: 2, kind: input, shape index: {}]
  %s3 = inlined_call_operand.hbm [shape: bf16[16,96], index: 3, kind: output, shape index: {}]
  %s4 = sld [smem:[#allocation0]]
  $region30: #{tpu_custom_call.1} parent=0
    _
  %s6 = ssub.s32 1, %s4
  %s7 = scalar_select 0, %s6, %s4
  $region1: #{tpu_custom_call.1} parent=0
    #allocation2 [shape = 'u8[4096]{0}', space=vmem, size = 0x1000, scoped, tag = 'input window, operand 0, single buffered']
    #allocation3 [shape = 's32[1]{0}', space=sflag, size = 0x4, scoped, tag = 'scoped memory for tpu_custom_call.1']
    #allocation4 [shape = 's32[1]{0}', space=sflag, size = 0x4, scoped, tag = 'scoped memory for tpu_custom_call.1']
    #allocation5 [shape = 'u8[4096]{0}', space=vmem, size = 0x1000, scoped, tag = 'input window, operand 1, single buffered']
    #allocation6 [shape = 's32[1]{0}', space=sflag, size = 0x4, scoped, tag = 'scoped memory for tpu_custom_call.1']
    #allocation7 [shape = 'u8[4096]{0}', space=vmem, size = 0x1000, scoped, tag = 'output window, operand 0, single buffered']
    %8 = vsyncpa [#allocation3], 0
    %9 = vsyncpa [#allocation6], 0
    %10 = vsyncpa [#allocation4], 0
    // Predicated region
    $region2: #{tpu_custom_call.1} parent=1 // pred_check
      _
    $region3: #{tpu_custom_call.1} parent=1 // pred_check_branch
      %12 = sbr.rel (0) target = $region5
    $region4: #{tpu_custom_call.1} parent=1 // pred_region
      %s14 = ssub.s32 128, 128
      %15 = vsyncadd [#allocation3], %s14
      %s16 = sshll.u32 [#allocation2], 4
      %s17 = int_to_ptr.vmem [resolvable:$true] %s16
      %22 = dma.hbm_to_vmem [thread:$0]  %s0, 128, %s17, [#allocation3], 64, 64, 4
    $region5: #{tpu_custom_call.1} parent=1 // pred_fallthru
      _
    // Predicated region
    $region6: #{tpu_custom_call.1} parent=1 // pred_check
      _
    $region7: #{tpu_custom_call.1} parent=1 // pred_check_branch
      %24 = sbr.rel (0) target = $region9
    $region8: #{tpu_custom_call.1} parent=1 // pred_region
      %s26 = ssub.s32 128, 128
      %27 = vsyncadd [#allocation6], %s26
      %s28 = sshll.u32 [#allocation5], 4
      %s29 = int_to_ptr.vmem [resolvable:$true] %s28
      %34 = dma.hbm_to_vmem [thread:$0]  %s1, 128, %s29, [#allocation6], 64, 64, 4
    $region9: #{tpu_custom_call.1} parent=1 // pred_fallthru
      _
    // Predicated region
    $region10: #{tpu_custom_call.1} parent=1 // pred_check
      _
    $region11: #{tpu_custom_call.1} parent=1 // pred_check_branch
      %36 = sbr.rel (0) target = $region13
    $region12: #{tpu_custom_call.1} parent=1 // pred_region
      _
    $region13: #{tpu_custom_call.1} parent=1 // pred_fallthru
      _
    // Predicated region
    $region14: #{tpu_custom_call.1} parent=1 // pred_check
      _
    $region15: #{tpu_custom_call.1} parent=1 // pred_check_branch
      %38 = sbr.rel (0) target = $region17
    $region16: #{tpu_custom_call.1} parent=1 // pred_region
      %39 = dma.done [#allocation3], 128
    $region17: #{tpu_custom_call.1} parent=1 // pred_fallthru
      _
    // Predicated region
    $region18: #{tpu_custom_call.1} parent=1 // pred_check
      _
    $region19: #{tpu_custom_call.1} parent=1 // pred_check_branch
      %41 = sbr.rel (0) target = $region21
    $region20: #{tpu_custom_call.1} parent=1 // pred_region
      %42 = dma.done [#allocation6], 128
    $region21: #{tpu_custom_call.1} parent=1 // pred_fallthru
      _
    %v44 = vld [vmem:[#allocation2] sm:$0xf]
    %v45 = vld [vmem:[#allocation2 + $0x4] sm:$0xf]
    %v46 = vld [vmem:[#allocation5] sm:$0xf]
    %v47 = vld [vmem:[#allocation5 + $0x4] sm:$0xf]
    %v48 = vld [vmem:[%s2] sm:$0x1]
    %v50 = vlaneseq
    %v51 = vshrl.u32 %v50, 7
    %v52 = vsub.s32 0, %v51
    %v53 = vrot.slane %v48, %v52
    %v57 = vunpack.c.l.b16 %v44
    %v58 = vunpack.c.l.b16 %v45
    %v59 = vpack.c.b16 %v58, %v57
    %v62 = vunpack.c.l.b16 %v46
    %v63 = vunpack.c.l.b16 %v47
    %v64 = vpack.c.b16 %v63, %v62
    %vm66 = vcmask 130048
    %v68 = vsel %vm66, %v59, 0
    %70 = vmatprep.subr.bf16.mxu0 0
    %71 = vmatpush1.bf16.msra.mxu0 %v64
    %72 = vmatprep.subr.bf16.mxu0 0
    %73 = vmatpush1.bf16.msra.mxu0 0
    %74 = vmatprep.subr.bf16.mxu0 0
    %75 = vmatpush1.bf16.msra.mxu0 0
    %76 = vmatprep.subr.bf16.mxu0 0
    %77 = vmatpush1.bf16.msra.mxu0 0
    %78 = vmatprep.subr.bf16.mxu0 0
    %79 = vmatpush1.bf16.msra.mxu0 0
    %80 = vmatprep.subr.bf16.mxu0 0
    %81 = vmatpush1.bf16.msra.mxu0 0
    %82 = vmatprep.subr.bf16.mxu0 0
    %83 = vmatpush1.bf16.msra.mxu0 0
    %84 = vmatprep.subr.bf16.mxu0 0
    %85 = vmatpush1.bf16.msra.mxu0 0
    %86 = vmatprep.subr.bf16.mxu0 0
    %87 = vmatpush1.bf16.msra.mxu0 0
    %88 = vmatprep.subr.bf16.mxu0 0
    %89 = vmatpush1.bf16.msra.mxu0 0
    %90 = vmatprep.subr.bf16.mxu0 0
    %91 = vmatpush1.bf16.msra.mxu0 0
    %92 = vmatprep.subr.bf16.mxu0 0
    %93 = vmatpush1.bf16.msra.mxu0 0
    %94 = vmatprep.subr.bf16.mxu0 0
    %95 = vmatpush1.bf16.msra.mxu0 0
    %96 = vmatprep.subr.bf16.mxu0 0
    %97 = vmatpush1.bf16.msra.mxu0 0
    %98 = vmatprep.subr.bf16.mxu0 0
    %99 = vmatpush1.bf16.msra.mxu0 0
    %100 = vmatprep.subr.bf16.mxu0 0
    %101 = vmatpush1.bf16.msra.mxu0 0
    %102 = vmatprep.mubr.bf16.mxu0 0
    %103 = vmatmul.mubr.bf16.gmra.mrb[0].mxu0 %v68
    %v104 = vpop.f32.mrb[0].mxu0
    %v105 = vadd.f32 %v53, %v104
    %v106 = vpop.f32.mrb[0].mxu0
    %v107 = vpop.f32.mrb[0].mxu0
    %v108 = vadd.f32 %v53, %v107
    %v109 = vpop.f32.mrb[0].mxu0
    %110 = vdwg.mxu0
    %v111 = vpack.c.bf16 %v108, %v105
    %v113 = vunpack.c.l.b16 %v111
    %v114 = vunpack.c.h.b16 %v111
    %v115 = vpack.c.b16 %v113, %v113
    %v116 = vpack.c.b16 %v114, %v114
    %vm119 = vcmask 781312
    %120 = vst.msk [vmem:[#allocation7] sm:$0xf] %vm119, %v115
    %121 = vst.msk [vmem:[#allocation7 + $0x4] sm:$0xf] %vm119, %v116
    // Predicated region
    $region22: #{tpu_custom_call.1} parent=1 // pred_check
      _
    $region23: #{tpu_custom_call.1} parent=1 // pred_check_branch
      %123 = sbr.rel (0) target = $region25
    $region24: #{tpu_custom_call.1} parent=1 // pred_region
      %s125 = ssub.s32 128, 128
      %126 = vsyncadd [#allocation4], %s125
      %s127 = sshll.u32 [#allocation7], 4
      %s128 = int_to_ptr.vmem [resolvable:$true] %s127
      %133 = dma.vmem_to_hbm [thread:$0]  %s128, 128, %s3, [#allocation4], 64, 64, 4
    $region25: #{tpu_custom_call.1} parent=1 // pred_fallthru
      _
    // Predicated region
    $region26: #{tpu_custom_call.1} parent=1 // pred_check
      _
    $region27: #{tpu_custom_call.1} parent=1 // pred_check_branch
      %135 = sbr.rel (0) target = $region29
    $region28: #{tpu_custom_call.1} parent=1 // pred_region
      %136 = dma.done [#allocation4], 128
    $region29: #{tpu_custom_call.1} parent=1 // pred_fallthru
      _
    %137 = vsyncpa [#allocation3], 1
    %138 = vsyncpa [#allocation6], 1
    %139 = vsyncpa [#allocation4], 1

</llo_original>
